<compile_context>
chip_gen: v7x
topology: tpu7x:2x2x1
jax: 0.10.0
libtpu: 0.0.40
codegen_flags: <defaults>
</compile_context>

<pallas_src>
import functools

import jax
import jax.numpy as jnp
from jax.experimental import pallas as pl
from jax.experimental.pallas import tpu as pltpu


# ------------------------------ helpers ------------------------------------ #

def _round_up(v, m):
    return ((v + m - 1) // m) * m


def _pad2(a, rows, cols):
    return jnp.zeros((rows, cols), a.dtype).at[: a.shape[0], : a.shape[1]].set(a)


def _pad1(a, rows):
    return jnp.zeros((rows,), a.dtype).at[: a.shape[0]].set(a)


_BUFFERED1_OK = None


def _buffered1_supported():
    """Probe whether this Pallas build accepts pipeline_mode=pl.Buffered(1)."""
    global _BUFFERED1_OK
    if _BUFFERED1_OK is None:
        try:
            def _k(x_ref, o_ref):
                o_ref[...] = x_ref[...] + 1.0

            y = pl.pallas_call(
                _k,
                out_shape=jax.ShapeDtypeStruct((8, 128), jnp.float32),
                grid=(1,),
                in_specs=[pl.BlockSpec((8, 128), lambda i: (0, 0),
                                       pipeline_mode=pl.Buffered(1))],
                out_specs=pl.BlockSpec((8, 128), lambda i: (0, 0)),
            )(jnp.zeros((8, 128), jnp.float32))
            jax.block_until_ready(y)
            _BUFFERED1_OK = True
        except Exception:
            _BUFFERED1_OK = False
    return _BUFFERED1_OK


def _resident_spec(shape):
    """BlockSpec for an operand that is identical for every grid step (VMEM resident).

    Residents gain nothing from double buffering; Buffered(1) halves their VMEM cost.
    Falls back to the default pipelining if buffer_count=1 is unsupported.
    """
    if _buffered1_supported():
        return pl.BlockSpec(shape, lambda i: (0, 0), pipeline_mode=pl.Buffered(1))
    return pl.BlockSpec(shape, lambda i: (0, 0))


def _vmem_limit_bytes(est_bytes):
    """Explicit scoped-VMEM limit: at least what the kernel needs (v5e's default scoped
    VMEM is only 16 MiB), capped safely below physical VMEM (128 MiB v5e/v6e, 64 MiB v7x)."""
    cap = 48 << 20                      # conservative fallback (below v7x physical 64 MiB)
    try:
        cap = int(0.75 * pltpu.get_tpu_info().vmem_capacity_bytes)
    except Exception:
        pass
    want = int(est_bytes * 1.5) + (8 << 20)   # headroom for layout padding / Mosaic scratch
    return int(max(32 << 20, min(want, cap)))


# ----------------------------- Pallas kernels ------------------------------ #

def _encoder_fused_kernel(a_ref, xw_ref, we2d_ref, wdec_ref, keep_ref,
                          hid_ref, repsd_ref):
    # all_hidden_i = relu(A_i @ (X @ W_enc))   -- encoder GCN, re-associated so the
    # streaming pass does one MXU matmul per A row-strip (bf16 in, f32 accumulate).
    h = jnp.dot(a_ref[...], xw_ref[...], preferred_element_type=jnp.float32)
    h = jnp.maximum(h, 0.0)
    hid_ref[...] = h.astype(hid_ref.dtype)

    # node_reps_i = keep_i * (h_i @ W_e2d^T)   -- encoder_to_decoder (bias-free) with the
    # re-mask (node_reps[mask_nodes] = 0) applied as a per-row [tile_m, 1] weight.
    # W_e2d stays in its native nn.Linear (out, in) layout: contract on last dims.
    r = jax.lax.dot_general(
        h.astype(jnp.bfloat16), we2d_ref[...],
        dimension_numbers=(((1,), (1,)), ((), ())),
        preferred_element_type=jnp.float32)
    r = r * keep_ref[...]

    # reps_dec_i = node_reps_i @ W_dec         -- decoder weight folded in here so that
    # kernel 2 reduces to recon = A_i @ reps_dec (one matmul on its critical path).
    rd = jnp.dot(r.astype(jnp.bfloat16), wdec_ref[...],
                 preferred_element_type=jnp.float32)
    repsd_ref[...] = rd.astype(repsd_ref.dtype)


def _decoder_loss_kernel(a_ref, repsd_ref, x_ref, w_ref, loss_ref, *, alpha):
    # recon_i = A_i @ (node_reps @ W_dec)      -- decoder GCN (no relu), re-associated.
    recon = jnp.dot(a_ref[...], repsd_ref[...], preferred_element_type=jnp.float32)

    # SCE loss per row via row reductions + rsqrt (EUP). Matches F.normalize(eps=1e-12):
    # 1/max(||v||, eps) == rsqrt(max(||v||^2, eps^2)). The eps is applied per factor
    # (two rsqrt calls) rather than on the product of squared norms so that all-zero
    # padded rows stay finite (1e-24 * 1e-24 would underflow f32 -> inf -> NaN).
    x = x_ref[...].astype(jnp.float32)
    eps2 = 1e-24
    sxx = jnp.sum(recon * recon, axis=-1, keepdims=True)
    syy = jnp.sum(x * x, axis=-1, keepdims=True)
    sxy = jnp.sum(recon * x, axis=-1, keepdims=True)
    cos = (sxy
           * jax.lax.rsqrt(jnp.maximum(sxx, eps2))
           * jax.lax.rsqrt(jnp.maximum(syy, eps2)))
    # alpha is a static Python int -> lowers to multiplies, no exp/log chain.
    per_row = (1.0 - cos) ** alpha
    # w_ref holds 1/num_mask on masked rows and 0 elsewhere (incl. padded rows), so
    # sum(per_row * w) == mean over masked rows; no ragged x[mask_nodes] gather needed.
    loss_ref[...] = (per_row * w_ref[...]).astype(loss_ref.dtype)


# ----------------------------- wrappers ------------------------------------ #

def encoder_fused(adj_b, xw_b, we2d_b, wdec_b, keep_col, *, tile_m):
    n_p, h_p = xw_b.shape
    f_p = wdec_b.shape[1]
    est = (2 * tile_m * n_p * 2                            # A strips (double-buffered bf16)
           + 2 * (n_p * h_p + h_p * h_p + h_p * f_p) * 2   # residents (worst case 2 bufs)
           + 2 * tile_m * 128 * 4                          # keep column (lane-padded f32)
           + 2 * tile_m * (h_p + f_p) * 2)                 # outputs (double-buffered bf16)
    return pl.pallas_call(
        _encoder_fused_kernel,
        out_shape=(jax.ShapeDtypeStruct((n_p, h_p), jnp.bfloat16),   # all_hidden (bf16 writeback)
                   jax.ShapeDtypeStruct((n_p, f_p), jnp.bfloat16)),  # reps_dec (feeds kernel 2 MXU)
        grid_spec=pltpu.PrefetchScalarGridSpec(
            num_scalar_prefetch=0,
            grid=(n_p // tile_m,),
            in_specs=[
                pl.BlockSpec((tile_m, n_p), lambda i: (i, 0)),   # A row strip (streamed)
                _resident_spec((n_p, h_p)),                      # XW = use_x @ W_enc (resident)
                _resident_spec((h_p, h_p)),                      # W_e2d (out, in)   (resident)
                _resident_spec((h_p, f_p)),                      # W_dec             (resident)
                pl.BlockSpec((tile_m, 1), lambda i: (i, 0)),     # keep weights (re-mask)
            ],
            out_specs=(
                pl.BlockSpec((tile_m, h_p), lambda i: (i, 0)),
                pl.BlockSpec((tile_m, f_p), lambda i: (i, 0)),
            ),
        ),
        compiler_params=pltpu.CompilerParams(
            dimension_semantics=("parallel",),
            vmem_limit_bytes=_vmem_limit_bytes(est)),
    )(adj_b, xw_b, we2d_b, wdec_b, keep_col)


def decoder_loss(adj_b, repsd_b, x_pad, lossw_col, *, tile_m, alpha):
    n_p = adj_b.shape[0]
    f_p = repsd_b.shape[1]
    est = (2 * tile_m * n_p * 2          # A strips (double-buffered bf16)
           + 2 * n_p * f_p * 2           # reps_dec resident (worst case 2 bufs)
           + 2 * tile_m * f_p * 4        # x rows (f32, streamed)
           + 4 * tile_m * 128 * 4)       # loss weights + loss rows (lane-padded)
    loss_rows = pl.pallas_call(
        functools.partial(_decoder_loss_kernel, alpha=alpha),
        out_shape=jax.ShapeDtypeStruct((n_p, 1), jnp.float32),
        grid_spec=pltpu.PrefetchScalarGridSpec(
            num_scalar_prefetch=0,
            grid=(n_p // tile_m,),
            in_specs=[
                pl.BlockSpec((tile_m, n_p), lambda i: (i, 0)),   # A row strip (streamed)
                _resident_spec((n_p, f_p)),                      # reps_dec (resident)
                pl.BlockSpec((tile_m, f_p), lambda i: (i, 0)),   # original x rows (loss ref)
                pl.BlockSpec((tile_m, 1), lambda i: (i, 0)),     # loss weights
            ],
            out_specs=pl.BlockSpec((tile_m, 1), lambda i: (i, 0)),
        ),
        compiler_params=pltpu.CompilerParams(
            dimension_semantics=("parallel",),
            vmem_limit_bytes=_vmem_limit_bytes(est)),
    )(adj_b, repsd_b, x_pad, lossw_col)
    # Per-row weighted values -> trivial final XLA sum keeps the row axis "parallel".
    # TODO(synk): at low mask rates, scalar-prefetched masked-row tile indices could skip
    # row tiles with no masked node (irrelevant at mask_rate=0.75: nearly every tile hits).
    return jnp.sum(loss_rows)


# --------------------------- GraphMAE forward ------------------------------ #

def graphmae_forward(x, adj, params, rng_key, *, mask_rate, replace_rate, alpha_l,
                     tile_m=256):
    """Reproduces GraphMAELoss.mask_attr_prediction (drop_edge_rate == 0)."""
    n, f = x.shape
    h = params["W_enc"].shape[1]
    mask_token_rate = 1.0 - replace_rate
    k_perm, k_permmask, k_noise = jax.random.split(rng_key, 3)

    # --- encoding_mask_noise (glue: data-dependent gather/scatter in plain JAX) ---
    perm = jax.random.permutation(k_perm, n)
    num_mask = int(mask_rate * n)
    mask_nodes = perm[:num_mask]

    num_noise = int(replace_rate * num_mask)
    perm_mask = jax.random.permutation(k_permmask, num_mask)
    token_nodes = mask_nodes[perm_mask[: int(mask_token_rate * num_mask)]]
    noise_nodes = mask_nodes[perm_mask[num_mask - num_noise:]]
    noise_to_be_chosen = jax.random.permutation(k_noise, n)[:num_noise]

    use_x = x
    use_x = use_x.at[token_nodes].set(0.0)
    use_x = use_x.at[noise_nodes].set(x[noise_to_be_chosen])
    use_x = use_x.at[token_nodes].add(params["enc_mask_token"][0])

    # Dense per-row multipliers replacing the in-between scatter / ragged gathers.
    keep_w = jnp.ones((n,), jnp.float32).at[mask_nodes].set(0.0)          # re-mask
    inv_num_mask = 1.0 / num_mask if num_mask > 0 else 0.0                # guard div-by-0
    loss_w = jnp.zeros((n,), jnp.float32).at[mask_nodes].set(inv_num_mask)

    # Re-associated encoder pre-matmul (tiny, stays in XLA): XW = use_x @ W_enc.
    xw = use_x @ params["W_enc"]

    # --- pad to TPU-friendly shapes: rows -> multiple of tile_m, features -> 128 lanes ---
    tile_m = min(tile_m, _round_up(n, 8))      # don't over-pad tiny graphs
    n_p = _round_up(n, tile_m)
    f_p = _round_up(f, 128)
    h_p = _round_up(h, 128)

    adj_b = _pad2(adj, n_p, n_p).astype(jnp.bfloat16)
    xw_b = _pad2(xw, n_p, h_p).astype(jnp.bfloat16)
    x_pad = _pad2(x, n_p, f_p)                                            # f32 loss reference
    we2d_b = _pad2(params["W_e2d"], h_p, h_p).astype(jnp.bfloat16)        # (out, in)
    wdec_b = _pad2(params["W_dec"], h_p, f_p).astype(jnp.bfloat16)
    keep_col = _pad1(keep_w, n_p).reshape(n_p, 1)
    lossw_col = _pad1(loss_w, n_p).reshape(n_p, 1)

    # --- kernel 1: encoder GCN + encoder_to_decoder + re-mask + folded W_dec ---
    all_hidden_b, reps_dec_b = encoder_fused(
        adj_b, xw_b, we2d_b, wdec_b, keep_col, tile_m=tile_m)

    # --- kernel 2: decoder GCN + SCE loss over masked nodes ---
    loss = decoder_loss(
        adj_b, reps_dec_b, x_pad, lossw_col, tile_m=tile_m, alpha=alpha_l)

    all_hidden = all_hidden_b[:n, :h].astype(jnp.float32)
    return loss, all_hidden


# --------------------------------- main ------------------------------------ #

if __name__ == "__main__":
    N = 64              # num nodes
    ENC_IN_DIM = 32     # node feature dim
    DEC_IN_DIM = 32     # hidden / decoder-input dim
    MASK_RATE = 0.75
    REPLACE_RATE = 0.1
    ALPHA_L = 2         # default alpha_l in GraphMAELoss.__init__ (static int)

    key = jax.random.PRNGKey(0)
    k_x, k_e0, k_e1, k_wenc, k_wdec, k_we2d, k_fwd = jax.random.split(key, 7)

    # Node features.
    x = jax.random.normal(k_x, (N, ENC_IN_DIM), dtype=jnp.float32)

    # Random graph -> dense symmetric normalized adjacency with self loops.
    # TODO(synk): at production graph sizes A should stay sparse (block-sparse SpMM via
    # scalar-prefetched nonzero-block indices) instead of a dense N^2 matrix.
    num_edges = 256
    src = jax.random.randint(k_e0, (num_edges,), 0, N)
    dst = jax.random.randint(k_e1, (num_edges,), 0, N)
    A = jnp.zeros((N, N), jnp.float32).at[src, dst].set(1.0)
    A = jnp.maximum(A, A.T) + jnp.eye(N, dtype=jnp.float32)
    d_inv_sqrt = 1.0 / jnp.sqrt(A.sum(axis=-1))
    adj = A * d_inv_sqrt[:, None] * d_inv_sqrt[None, :]

    # Deterministic synthetic parameters (shapes follow GraphMAELoss.__init__).
    params = {
        "enc_mask_token": jnp.zeros((1, ENC_IN_DIM), jnp.float32),        # nn.Parameter(zeros)
        "W_enc": 0.1 * jax.random.normal(k_wenc, (ENC_IN_DIM, DEC_IN_DIM), jnp.float32),
        "W_dec": 0.1 * jax.random.normal(k_wdec, (DEC_IN_DIM, ENC_IN_DIM), jnp.float32),
        "W_e2d": 0.1 * jax.random.normal(k_we2d, (DEC_IN_DIM, DEC_IN_DIM), jnp.float32),  # (out, in)
    }

    # TODO(synk): drop_edge (random edge masking) is a host-side graph rewrite with no
    # clean Pallas equivalent; drop_edge_rate defaults to 0.0 so it is a no-op here.
    loss, x_hidden = graphmae_forward(
        x, adj, params, k_fwd,
        mask_rate=MASK_RATE, replace_rate=REPLACE_RATE, alpha_l=ALPHA_L,
    )
    loss_item = {"loss": float(loss)}  # mirrors forward()'s loss.item()

    jax.block_until_ready((loss, x_hidden))
    assert bool(jnp.isfinite(loss)), "loss is not finite"
    print("KERNEL_OK")
</pallas_src>

<mosaic_0001>
module attributes {stable_mosaic.version = 11 : i64} {
  func.func @_k(%arg0: i32, %arg1: memref<8x128xf32, #tpu.memory_space<vmem>>, %arg2: memref<8x128xf32, #tpu.memory_space<vmem>>) attributes {dimension_semantics = [#tpu.dimension_semantics<arbitrary>], iteration_bounds = array<i64: 1>, scalar_prefetch = 0 : i64, scratch_operands = 0 : i64, tpu.core_type = #tpu.core_type<tc>, window_params = [{pipeline_mode = #tpu.pipeline_mode<synchronous>, transform_indices = @transform_0, window_bounds = array<i64: 8, 128>}, {pipeline_mode = #tpu.pipeline_mode<synchronous>, transform_indices = @transform_1, window_bounds = array<i64: 8, 128>}]} {
    %c0 = arith.constant 0 : index
    %c0_0 = arith.constant 0 : index
    %0 = vector.load %arg1[%c0, %c0_0] : memref<8x128xf32, #tpu.memory_space<vmem>>, vector<8x128xf32>
    %cst = arith.constant 1.000000e+00 : f32
    %1 = vector.broadcast %cst : f32 to vector<8x128xf32>
    %2 = arith.addf %0, %1 : vector<8x128xf32>
    %c0_1 = arith.constant 0 : index
    %c0_2 = arith.constant 0 : index
    %3 = vector.load %arg2[%c0_1, %c0_2] : memref<8x128xf32, #tpu.memory_space<vmem>>, vector<8x128xf32>
    tpu.vector_store %arg2[%c0_1, %c0_2], %2 {strides = array<i32>} : memref<8x128xf32, #tpu.memory_space<vmem>>, vector<8x128xf32>,
    return
  }
  func.func @transform_0(%arg0: i32) -> (i32, i32) {
    %c0_i32 = arith.constant 0 : i32
    %c0_i32_0 = arith.constant 0 : i32
    %c0_i32_1 = arith.constant 0 : i32
    return %c0_i32, %c0_i32_0 : i32, i32
  }
  func.func @transform_1(%arg0: i32) -> (i32, i32) {
    %c0_i32 = arith.constant 0 : i32
    %c0_i32_0 = arith.constant 0 : i32
    %c0_i32_1 = arith.constant 0 : i32
    return %c0_i32, %c0_i32_0 : i32, i32
  }
}

module attributes {stable_mosaic.version = 11 : i64} {
  func.func @_encoder_fused_kernel(%arg0: i32, %arg1: memref<64x64xbf16, #tpu.memory_space<vmem>>, %arg2: memref<64x128xbf16, #tpu.memory_space<vmem>>, %arg3: memref<128x128xbf16, #tpu.memory_space<vmem>>, %arg4: memref<128x128xbf16, #tpu.memory_space<vmem>>, %arg5: memref<64x1xf32, #tpu.memory_space<vmem>>, %arg6: memref<64x128xbf16, #tpu.memory_space<vmem>>, %arg7: memref<64x128xbf16, #tpu.memory_space<vmem>>) attributes {dimension_semantics = [#tpu.dimension_semantics<parallel>], iteration_bounds = array<i64: 1>, scalar_prefetch = 0 : i64, scratch_operands = 0 : i64, tpu.core_type = #tpu.core_type<tc>, window_params = [{transform_indices = @transform_0, window_bounds = array<i64: 64, 64>}, {pipeline_mode = #tpu.pipeline_mode<synchronous>, transform_indices = @transform_1, window_bounds = array<i64: 64, 128>}, {pipeline_mode = #tpu.pipeline_mode<synchronous>, transform_indices = @transform_2, window_bounds = array<i64: 128, 128>}, {pipeline_mode = #tpu.pipeline_mode<synchronous>, transform_indices = @transform_3, window_bounds = array<i64: 128, 128>}, {transform_indices = @transform_4, window_bounds = array<i64: 64, 1>}, {transform_indices = @transform_5, window_bounds = array<i64: 64, 128>}, {transform_indices = @transform_6, window_bounds = array<i64: 64, 128>}]} {
    %c0 = arith.constant 0 : index
    %c0_0 = arith.constant 0 : index
    %0 = vector.load %arg1[%c0, %c0_0] : memref<64x64xbf16, #tpu.memory_space<vmem>>, vector<64x64xbf16>
    %c0_1 = arith.constant 0 : index
    %c0_2 = arith.constant 0 : index
    %1 = vector.load %arg2[%c0_1, %c0_2] : memref<64x128xbf16, #tpu.memory_space<vmem>>, vector<64x128xbf16>
    %cst = arith.constant dense<0.000000e+00> : vector<64x128xf32>
    %2 = tpu.matmul %0, %1, %cst {dimension_numbers = #tpu.dot_dimension_numbers<[1], [0], [0], [1], [0, 0, 1, 1], [], []>} : vector<64x64xbf16>, vector<64x128xbf16>, vector<64x128xf32> -> vector<64x128xf32>
    %cst_3 = arith.constant 0.000000e+00 : f32
    %3 = vector.broadcast %cst_3 : f32 to vector<64x128xf32>
    %4 = arith.maximumf %2, %3 : vector<64x128xf32>
    %5 = arith.truncf %4 : vector<64x128xf32> to vector<64x128xbf16>
    %c0_4 = arith.constant 0 : index
    %c0_5 = arith.constant 0 : index
    %6 = vector.load %arg6[%c0_4, %c0_5] : memref<64x128xbf16, #tpu.memory_space<vmem>>, vector<64x128xbf16>
    tpu.vector_store %arg6[%c0_4, %c0_5], %5 {strides = array<i32>} : memref<64x128xbf16, #tpu.memory_space<vmem>>, vector<64x128xbf16>,
    %7 = arith.truncf %4 : vector<64x128xf32> to vector<64x128xbf16>
    %c0_6 = arith.constant 0 : index
    %c0_7 = arith.constant 0 : index
    %8 = vector.load %arg3[%c0_6, %c0_7] : memref<128x128xbf16, #tpu.memory_space<vmem>>, vector<128x128xbf16>
    %cst_8 = arith.constant dense<0.000000e+00> : vector<64x128xf32>
    %9 = tpu.matmul %7, %8, %cst_8 {dimension_numbers = #tpu.dot_dimension_numbers<[1], [1], [0], [0], [0, 0, 1, 0], [], []>} : vector<64x128xbf16>, vector<128x128xbf16>, vector<64x128xf32> -> vector<64x128xf32>
    %c0_9 = arith.constant 0 : index
    %c0_10 = arith.constant 0 : index
    %10 = vector.load %arg5[%c0_9, %c0_10] : memref<64x1xf32, #tpu.memory_space<vmem>>, vector<64x1xf32>
    %11 = vector.broadcast %10 : vector<64x1xf32> to vector<64x128xf32>
    %12 = arith.mulf %9, %11 : vector<64x128xf32>
    %13 = arith.truncf %12 : vector<64x128xf32> to vector<64x128xbf16>
    %c0_11 = arith.constant 0 : index
    %c0_12 = arith.constant 0 : index
    %14 = vector.load %arg4[%c0_11, %c0_12] : memref<128x128xbf16, #tpu.memory_space<vmem>>, vector<128x128xbf16>
    %cst_13 = arith.constant dense<0.000000e+00> : vector<64x128xf32>
    %15 = tpu.matmul %13, %14, %cst_13 {dimension_numbers = #tpu.dot_dimension_numbers<[1], [0], [0], [1], [0, 0, 1, 1], [], []>} : vector<64x128xbf16>, vector<128x128xbf16>, vector<64x128xf32> -> vector<64x128xf32>
    %16 = arith.truncf %15 : vector<64x128xf32> to vector<64x128xbf16>
    %c0_14 = arith.constant 0 : index
    %c0_15 = arith.constant 0 : index
    %17 = vector.load %arg7[%c0_14, %c0_15] : memref<64x128xbf16, #tpu.memory_space<vmem>>, vector<64x128xbf16>
    tpu.vector_store %arg7[%c0_14, %c0_15], %16 {strides = array<i32>} : memref<64x128xbf16, #tpu.memory_space<vmem>>, vector<64x128xbf16>,
    return
  }
  func.func @transform_0(%arg0: i32) -> (i32, i32) {
    %c0_i32 = arith.constant 0 : i32
    %c0_i32_0 = arith.constant 0 : i32
    return %arg0, %c0_i32 : i32, i32
  }
  func.func @transform_1(%arg0: i32) -> (i32, i32) {
    %c0_i32 = arith.constant 0 : i32
    %c0_i32_0 = arith.constant 0 : i32
    %c0_i32_1 = arith.constant 0 : i32
    return %c0_i32, %c0_i32_0 : i32, i32
  }
  func.func @transform_2(%arg0: i32) -> (i32, i32) {
    %c0_i32 = arith.constant 0 : i32
    %c0_i32_0 = arith.constant 0 : i32
    %c0_i32_1 = arith.constant 0 : i32
    return %c0_i32, %c0_i32_0 : i32, i32
  }
  func.func @transform_3(%arg0: i32) -> (i32, i32) {
    %c0_i32 = arith.constant 0 : i32
    %c0_i32_0 = arith.constant 0 : i32
    %c0_i32_1 = arith.constant 0 : i32
    return %c0_i32, %c0_i32_0 : i32, i32
  }
  func.func @transform_4(%arg0: i32) -> (i32, i32) {
    %c0_i32 = arith.constant 0 : i32
    %c0_i32_0 = arith.constant 0 : i32
    return %arg0, %c0_i32 : i32, i32
  }
  func.func @transform_5(%arg0: i32) -> (i32, i32) {
    %c0_i32 = arith.constant 0 : i32
    %c0_i32_0 = arith.constant 0 : i32
    return %arg0, %c0_i32 : i32, i32
  }
  func.func @transform_6(%arg0: i32) -> (i32, i32) {
    %c0_i32 = arith.constant 0 : i32
    %c0_i32_0 = arith.constant 0 : i32
    return %arg0, %c0_i32 : i32, i32
  }
}

</mosaic_0001>

<llo_original>
// kernel: tpu_custom_call.1
$region0: #{tpu_custom_call.1}
  #allocation0 [shape = 'u32[]', space=smem, size = 0x4, offset = 0x4, fixed_abs, tag = 'smem constant byte address 0x4 - core index']
  #allocation1 [shape = 'u32[144,128]{1,0:T(1,128)}', space=vmem, size = 0x12000, scoped, tag = 'internal scratch']
  %s0 = inlined_call_operand.hbm [shape: f32[8,128], index: 0, kind: input, shape index: {}]
  %s1 = inlined_call_operand.hbm [shape: f32[8,128], index: 1, kind: output, shape index: {}]
  %s2 = sld [smem:[#allocation0]]
  $region18: #{tpu_custom_call.1} parent=0
    _
  %s4 = ssub.s32 1, %s2
  %s5 = scalar_select 0, %s4, %s2
  $region1: #{tpu_custom_call.1} parent=0
    #allocation2 [shape = 'u8[4096]{0}', space=vmem, size = 0x1000, scoped, tag = 'input window, operand 0, single buffered']
    #allocation3 [shape = 's32[1]{0}', space=sflag, size = 0x4, scoped, tag = 'scoped memory for tpu_custom_call.1']
    #allocation4 [shape = 's32[1]{0}', space=sflag, size = 0x4, scoped, tag = 'scoped memory for tpu_custom_call.1']
    #allocation5 [shape = 'u8[4096]{0}', space=vmem, size = 0x1000, scoped, tag = 'output window, operand 0, single buffered']
    %6 = vsyncpa [#allocation3], 0
    %7 = vsyncpa [#allocation4], 0
    // Predicated region
    $region2: #{tpu_custom_call.1} parent=1 // pred_check
      _
    $region3: #{tpu_custom_call.1} parent=1 // pred_check_branch
      %9 = sbr.rel (0) target = $region5
    $region4: #{tpu_custom_call.1} parent=1 // pred_region
      %s11 = ssub.s32 128, 128
      %12 = vsyncadd [#allocation3], %s11
      %s14 = sshll.u32 [#allocation2], 4
      %s15 = int_to_ptr.vmem [resolvable:$true] %s14
      %17 = dma.hbm_to_vmem [thread:$0]  %s0, 128, %s15, [#allocation3]
    $region5: #{tpu_custom_call.1} parent=1 // pred_fallthru
      _
    // Predicated region
    $region6: #{tpu_custom_call.1} parent=1 // pred_check
      _
    $region7: #{tpu_custom_call.1} parent=1 // pred_check_branch
      %19 = sbr.rel (0) target = $region9
    $region8: #{tpu_custom_call.1} parent=1 // pred_region
      %20 = dma.done [#allocation3], 128
    $region9: #{tpu_custom_call.1} parent=1 // pred_fallthru
      _
    %v21 = vld [vmem:[#allocation2] sm:$0xff]
    %v22 = vadd.f32 %v21, 1.0
    %23 = vst [vmem:[#allocation5] sm:$0xff] %v22
    // Predicated region
    $region10: #{tpu_custom_call.1} parent=1 // pred_check
      _
    $region11: #{tpu_custom_call.1} parent=1 // pred_check_branch
      %25 = sbr.rel (0) target = $region13
    $region12: #{tpu_custom_call.1} parent=1 // pred_region
      %s27 = ssub.s32 128, 128
      %28 = vsyncadd [#allocation4], %s27
      %s30 = sshll.u32 [#allocation5], 4
      %s31 = int_to_ptr.vmem [resolvable:$true] %s30
      %33 = dma.vmem_to_hbm [thread:$0]  %s31, 128, %s1, [#allocation4]
    $region13: #{tpu_custom_call.1} parent=1 // pred_fallthru
      _
    // Predicated region
    $region14: #{tpu_custom_call.1} parent=1 // pred_check
      _
    $region15: #{tpu_custom_call.1} parent=1 // pred_check_branch
      %35 = sbr.rel (0) target = $region17
    $region16: #{tpu_custom_call.1} parent=1 // pred_region
      %36 = dma.done [#allocation4], 128
    $region17: #{tpu_custom_call.1} parent=1 // pred_fallthru
      _
    %37 = vsyncpa [#allocation3], 1
    %38 = vsyncpa [#allocation4], 1

// kernel: tpu_custom_call.1
$region0: #{tpu_custom_call.1}
  #allocation0 [shape = 'u32[]', space=smem, size = 0x4, offset = 0x4, fixed_abs, tag = 'smem constant byte address 0x4 - core index']
  #allocation1 [shape = 'u32[144,128]{1,0:T(1,128)}', space=vmem, size = 0x12000, scoped, tag = 'internal scratch']
  %s0 = inlined_call_operand.hbm [shape: bf16[64,64], index: 0, kind: input, shape index: {}]
  %s1 = inlined_call_operand.hbm [shape: bf16[64,128], index: 1, kind: input, shape index: {}]
  %s2 = inlined_call_operand.vmem [shape: bf16[128,128], index: 2, kind: input, shape index: {}]
  %s3 = inlined_call_operand.hbm [shape: bf16[128,128], index: 3, kind: input, shape index: {}]
  %s4 = inlined_call_operand.vmem [shape: f32[64,1], index: 4, kind: input, shape index: {}]
  %s5 = inlined_call_operand.hbm [shape: bf16[64,128], index: 5, kind: output, shape index: {0}]
  %s6 = inlined_call_operand.hbm [shape: bf16[64,128], index: 6, kind: output, shape index: {1}]
  %7 = xla_tuple %s5, %s6
  %s8 = sld [smem:[#allocation0]]
  $region50: #{tpu_custom_call.1} parent=0
    _
  %s10 = ssub.s32 1, %s8
  %s11 = scalar_select 0, %s10, %s8
  $region1: #{tpu_custom_call.1} parent=0
    #allocation2 [shape = 'u8[16384]{0}', space=vmem, size = 0x4000, scoped, tag = 'input window, operand 0, single buffered']
    #allocation3 [shape = 's32[1]{0}', space=sflag, size = 0x4, scoped, tag = 'scoped memory for tpu_custom_call.1']
    #allocation4 [shape = 's32[1]{0}', space=sflag, size = 0x4, scoped, tag = 'scoped memory for tpu_custom_call.1']
    #allocation5 [shape = 'u8[16384]{0}', space=vmem, size = 0x4000, scoped, tag = 'input window, operand 1, single buffered']
    #allocation6 [shape = 's32[1]{0}', space=sflag, size = 0x4, scoped, tag = 'scoped memory for tpu_custom_call.1']
    #allocation7 [shape = 'u8[32768]{0}', space=vmem, size = 0x8000, scoped, tag = 'input window, operand 3, single buffered']
    #allocation8 [shape = 'u8[16384]{0}', space=vmem, size = 0x4000, scoped, tag = 'output window, operand 0, single buffered']
    #allocation9 [shape = 'u8[16384]{0}', space=vmem, size = 0x4000, scoped, tag = 'output window, operand 1, single buffered']
    #allocation10 [shape = 's32[1]{0}', space=sflag, size = 0x4, scoped, tag = 'scoped memory for tpu_custom_call.1']
    %12 = vsyncpa [#allocation3], 0
    %13 = vsyncpa [#allocation6], 0
    %14 = vsyncpa [#allocation4], 0
    %15 = vsyncpa [#allocation10], 0
    // Predicated region
    $region2: #{tpu_custom_call.1} parent=1 // pred_check
      _
    $region3: #{tpu_custom_call.1} parent=1 // pred_check_branch
      %17 = sbr.rel (0) target = $region5
    $region4: #{tpu_custom_call.1} parent=1 // pred_region
      %s19 = ssub.s32 512, 512
      %20 = vsyncadd [#allocation3], %s19
      %s21 = sshll.u32 [#allocation2], 4
      %s22 = int_to_ptr.vmem [resolvable:$true] %s21
      %27 = dma.hbm_to_vmem [thread:$0]  %s0, 512, %s22, [#allocation3], 64, 64, 4
    $region5: #{tpu_custom_call.1} parent=1 // pred_fallthru
      _
    // Predicated region
    $region6: #{tpu_custom_call.1} parent=1 // pred_check
      _
    $region7: #{tpu_custom_call.1} parent=1 // pred_check_branch
      %29 = sbr.rel (0) target = $region9
    $region8: #{tpu_custom_call.1} parent=1 // pred_region
      %s31 = ssub.s32 512, 512
      %32 = vsyncadd [#allocation6], %s31
      %s33 = sshll.u32 [#allocation5], 4
      %s34 = int_to_ptr.vmem [resolvable:$true] %s33
      %39 = dma.hbm_to_vmem [thread:$0]  %s1, 512, %s34, [#allocation6], 64, 64, 4
    $region9: #{tpu_custom_call.1} parent=1 // pred_fallthru
      _
    // Predicated region
    $region10: #{tpu_custom_call.1} parent=1 // pred_check
      _
    $region11: #{tpu_custom_call.1} parent=1 // pred_check_branch
      %41 = sbr.rel (0) target = $region13
    $region12: #{tpu_custom_call.1} parent=1 // pred_region
      _
    $region13: #{tpu_custom_call.1} parent=1 // pred_fallthru
      _
    // Predicated region
    $region14: #{tpu_custom_call.1} parent=1 // pred_check
      _
    $region15: #{tpu_custom_call.1} parent=1 // pred_check_branch
      %43 = sbr.rel (0) target = $region17
    $region16: #{tpu_custom_call.1} parent=1 // pred_region
      %s45 = ssub.s32 1024, 1024
      %46 = vsyncadd [#allocation6], %s45
      %s47 = sshll.u32 [#allocation7], 4
      %s48 = int_to_ptr.vmem [resolvable:$true] %s47
      %53 = dma.hbm_to_vmem [thread:$0]  %s3, 1024, %s48, [#allocation6], 64, 64, 4
    $region17: #{tpu_custom_call.1} parent=1 // pred_fallthru
      _
    // Predicated region
    $region18: #{tpu_custom_call.1} parent=1 // pred_check
      _
    $region19: #{tpu_custom_call.1} parent=1 // pred_check_branch
      %55 = sbr.rel (0) target = $region21
    $region20: #{tpu_custom_call.1} parent=1 // pred_region
      _
    $region21: #{tpu_custom_call.1} parent=1 // pred_fallthru
      _
    // Predicated region
    $region22: #{tpu_custom_call.1} parent=1 // pred_check
      _
    $region23: #{tpu_custom_call.1} parent=1 // pred_check_branch
      %57 = sbr.rel (0) target = $region25
    $region24: #{tpu_custom_call.1} parent=1 // pred_region
      %58 = dma.done [#allocation3], 512
    $region25: #{tpu_custom_call.1} parent=1 // pred_fallthru
      _
    // Predicated region
    $region26: #{tpu_custom_call.1} parent=1 // pred_check
      _
    $region27: #{tpu_custom_call.1} parent=1 // pred_check_branch
      %60 = sbr.rel (0) target = $region29
    $region28: #{tpu_custom_call.1} parent=1 // pred_region
      %61 = dma.done [#allocation6], 512
    $region29: #{tpu_custom_call.1} parent=1 // pred_fallthru
      _
    // Predicated region
    $region30: #{tpu_custom_call.1} parent=1 // pred_check
      _
    $region31: #{tpu_custom_call.1} parent=1 // pred_check_branch
      %63 = sbr.rel (0) target = $region33
    $region32: #{tpu_custom_call.1} parent=1 // pred_region
      %64 = dma.done [#allocation6], 1024
    $region33: #{tpu_custom_call.1} parent=1 // pred_fallthru
      _
    %v66 = vld [vmem:[#allocation2] sm:$0xf]
    %v67 = vld [vmem:[#allocation2 + $0x4] sm:$0xf]
    %v68 = vld [vmem:[#allocation2 + $0x8] sm:$0xf]
    %v69 = vld [vmem:[#allocation2 + $0xc] sm:$0xf]
    %v70 = vld [vmem:[#allocation2 + $0x10] sm:$0xf]
    %v71 = vld [vmem:[#allocation2 + $0x14] sm:$0xf]
    %v72 = vld [vmem:[#allocation2 + $0x18] sm:$0xf]
    %v73 = vld [vmem:[#allocation2 + $0x1c] sm:$0xf]
    %v74 = vld [vmem:[#allocation5] sm:$0xf]
    %v75 = vld [vmem:[#allocation5 + $0x4] sm:$0xf]
    %v76 = vld [vmem:[#allocation5 + $0x8] sm:$0xf]
    %v77 = vld [vmem:[#allocation5 + $0xc] sm:$0xf]
    %v78 = vld [vmem:[#allocation5 + $0x10] sm:$0xf]
    %v79 = vld [vmem:[#allocation5 + $0x14] sm:$0xf]
    %v80 = vld [vmem:[#allocation5 + $0x18] sm:$0xf]
    %v81 = vld [vmem:[#allocation5 + $0x1c] sm:$0xf]
    %v90 = vunpack.c.l.b16 %v66
    %v91 = vunpack.c.l.b16 %v67
    %v92 = vunpack.c.l.b16 %v68
    %v93 = vunpack.c.l.b16 %v69
    %v94 = vunpack.c.l.b16 %v70
    %v95 = vunpack.c.l.b16 %v71
    %v96 = vunpack.c.l.b16 %v72
    %v97 = vunpack.c.l.b16 %v73
    %v98 = vpack.c.b16 %v91, %v90
    %v99 = vpack.c.b16 %v93, %v92
    %v100 = vpack.c.b16 %v95, %v94
    %v101 = vpack.c.b16 %v97, %v96
    %v110 = vunpack.c.l.b16 %v74
    %v111 = vunpack.c.l.b16 %v75
    %v112 = vunpack.c.l.b16 %v76
    %v113 = vunpack.c.l.b16 %v77
    %v114 = vunpack.c.l.b16 %v78
    %v115 = vunpack.c.l.b16 %v79
    %v116 = vunpack.c.l.b16 %v80
    %v117 = vunpack.c.l.b16 %v81
    %v118 = vpack.c.b16 %v111, %v110
    %v119 = vpack.c.b16 %v113, %v112
    %v120 = vpack.c.b16 %v115, %v114
    %v121 = vpack.c.b16 %v117, %v116
    %vm126 = vcmask 523264
    %v128 = vsel %vm126, %v98, 0
    %v131 = vsel %vm126, %v99, 0
    %v134 = vsel %vm126, %v100, 0
    %v137 = vsel %vm126, %v101, 0
    %139 = vmatprep.subr.bf16.mxu0 0
    %140 = vmatpush1.bf16.msra.mxu0 %v118
    %141 = vmatprep.subr.bf16.mxu0 0
    %142 = vmatpush1.bf16.msra.mxu0 %v119
    %143 = vmatprep.subr.bf16.mxu0 0
    %144 = vmatpush1.bf16.msra.mxu0 %v120
    %145 = vmatprep.subr.bf16.mxu0 0
    %146 = vmatpush1.bf16.msra.mxu0 %v121
    %147 = vmatprep.subr.bf16.mxu0 0
    %148 = vmatpush1.bf16.msra.mxu0 0
    %149 = vmatprep.subr.bf16.mxu0 0
    %150 = vmatpush1.bf16.msra.mxu0 0
    %151 = vmatprep.subr.bf16.mxu0 0
    %152 = vmatpush1.bf16.msra.mxu0 0
    %153 = vmatprep.subr.bf16.mxu0 0
    %154 = vmatpush1.bf16.msra.mxu0 0
    %155 = vmatprep.subr.bf16.mxu0 0
    %156 = vmatpush1.bf16.msra.mxu0 0
    %157 = vmatprep.subr.bf16.mxu0 0
    %158 = vmatpush1.bf16.msra.mxu0 0
    %159 = vmatprep.subr.bf16.mxu0 0
    %160 = vmatpush1.bf16.msra.mxu0 0
    %161 = vmatprep.subr.bf16.mxu0 0
    %162 = vmatpush1.bf16.msra.mxu0 0
    %163 = vmatprep.subr.bf16.mxu0 0
    %164 = vmatpush1.bf16.msra.mxu0 0
    %165 = vmatprep.subr.bf16.mxu0 0
    %166 = vmatpush1.bf16.msra.mxu0 0
    %167 = vmatprep.subr.bf16.mxu0 0
    %168 = vmatpush1.bf16.msra.mxu0 0
    %169 = vmatprep.subr.bf16.mxu0 0
    %170 = vmatpush1.bf16.msra.mxu0 0
    %171 = vmatprep.mubr.bf16.mxu0 0
    %172 = vmatmul.mubr.bf16.gmra.mrb[0].mxu0 %v128
    %v173 = vpop.f32.mrb[0].mxu0
    %v174 = vadd.f32 0.0, %v173
    %v175 = vpop.f32.mrb[0].mxu0
    %v176 = vpop.f32.mrb[0].mxu0
    %v177 = vadd.f32 0.0, %v176
    %v178 = vpop.f32.mrb[0].mxu0
    %179 = vmatprep.mubr.bf16.mxu0 0
    %180 = vmatmul.mubr.bf16.gmra.mrb[0].mxu0 %v131
    %v181 = vpop.f32.mrb[0].mxu0
    %v182 = vadd.f32 0.0, %v181
    %v183 = vpop.f32.mrb[0].mxu0
    %v184 = vpop.f32.mrb[0].mxu0
    %v185 = vadd.f32 0.0, %v184
    %v186 = vpop.f32.mrb[0].mxu0
    %187 = vmatprep.mubr.bf16.mxu0 0
    %188 = vmatmul.mubr.bf16.gmra.mrb[0].mxu0 %v134
    %v189 = vpop.f32.mrb[0].mxu0
    %v190 = vadd.f32 0.0, %v189
    %v191 = vpop.f32.mrb[0].mxu0
    %v192 = vpop.f32.mrb[0].mxu0
    %v193 = vadd.f32 0.0, %v192
    %v194 = vpop.f32.mrb[0].mxu0
    %195 = vmatprep.mubr.bf16.mxu0 0
    %196 = vmatmul.mubr.bf16.gmra.mrb[0].mxu0 %v137
    %v197 = vpop.f32.mrb[0].mxu0
    %v198 = vadd.f32 0.0, %v197
    %v199 = vpop.f32.mrb[0].mxu0
    %v200 = vpop.f32.mrb[0].mxu0
    %v201 = vadd.f32 0.0, %v200
    %v202 = vpop.f32.mrb[0].mxu0
    %203 = vdwg.mxu0
    %v204 = vmax.f32 %v174, 0.0
    %v205 = vmax.f32 %v177, 0.0
    %v206 = vmax.f32 %v182, 0.0
    %v207 = vmax.f32 %v185, 0.0
    %v208 = vmax.f32 %v190, 0.0
    %v209 = vmax.f32 %v193, 0.0
    %v210 = vmax.f32 %v198, 0.0
    %v211 = vmax.f32 %v201, 0.0
    %v212 = vpack.c.bf16 %v205, %v204
    %v213 = vpack.c.bf16 %v207, %v206
    %v214 = vpack.c.bf16 %v209, %v208
    %v215 = vpack.c.bf16 %v211, %v210
    %v220 = vunpack.c.l.b16 %v212
    %v221 = vunpack.c.h.b16 %v212
    %v222 = vunpack.c.l.b16 %v213
    %v223 = vunpack.c.h.b16 %v213
    %v224 = vunpack.c.l.b16 %v214
    %v225 = vunpack.c.h.b16 %v214
    %v226 = vunpack.c.l.b16 %v215
    %v227 = vunpack.c.h.b16 %v215
    %v228 = vpack.c.b16 %v220, %v220
    %v229 = vpack.c.b16 %v221, %v221
    %v230 = vpack.c.b16 %v222, %v222
    %v231 = vpack.c.b16 %v223, %v223
    %v232 = vpack.c.b16 %v224, %v224
    %v233 = vpack.c.b16 %v225, %v225
    %v234 = vpack.c.b16 %v226, %v226
    %v235 = vpack.c.b16 %v227, %v227
    %244 = vst [vmem:[#allocation8] sm:$0xf] %v228
    %245 = vst [vmem:[#allocation8 + $0x4] sm:$0xf] %v229
    %246 = vst [vmem:[#allocation8 + $0x8] sm:$0xf] %v230
    %247 = vst [vmem:[#allocation8 + $0xc] sm:$0xf] %v231
    %248 = vst [vmem:[#allocation8 + $0x10] sm:$0xf] %v232
    %249 = vst [vmem:[#allocation8 + $0x14] sm:$0xf] %v233
    %250 = vst [vmem:[#allocation8 + $0x18] sm:$0xf] %v234
    %251 = vst [vmem:[#allocation8 + $0x1c] sm:$0xf] %v235
    %v252 = vld [vmem:[%s2] sm:$0xf]
    %v253 = vld [vmem:[%s2 + $0x4] sm:$0xf]
    %v254 = vld [vmem:[%s2 + $0x8] sm:$0xf]
    %v255 = vld [vmem:[%s2 + $0xc] sm:$0xf]
    %v256 = vld [vmem:[%s2 + $0x10] sm:$0xf]
    %v257 = vld [vmem:[%s2 + $0x14] sm:$0xf]
    %v258 = vld [vmem:[%s2 + $0x18] sm:$0xf]
    %v259 = vld [vmem:[%s2 + $0x1c] sm:$0xf]
    %v260 = vld [vmem:[%s2 + $0x20] sm:$0xf]
    %v261 = vld [vmem:[%s2 + $0x24] sm:$0xf]
    %v262 = vld [vmem:[%s2 + $0x28] sm:$0xf]
    %v263 = vld [vmem:[%s2 + $0x2c] sm:$0xf]
    %v264 = vld [vmem:[%s2 + $0x30] sm:$0xf]
    %v265 = vld [vmem:[%s2 + $0x34] sm:$0xf]
    %v266 = vld [vmem:[%s2 + $0x38] sm:$0xf]
    %v267 = vld [vmem:[%s2 + $0x3c] sm:$0xf]
    %v284 = vunpack.c.l.b16 %v252
    %v285 = vunpack.c.l.b16 %v253
    %v286 = vunpack.c.l.b16 %v254
    %v287 = vunpack.c.l.b16 %v255
    %v288 = vunpack.c.l.b16 %v256
    %v289 = vunpack.c.l.b16 %v257
    %v290 = vunpack.c.l.b16 %v258
    %v291 = vunpack.c.l.b16 %v259
    %v292 = vunpack.c.l.b16 %v260
    %v293 = vunpack.c.l.b16 %v261
    %v294 = vunpack.c.l.b16 %v262
    %v295 = vunpack.c.l.b16 %v263
    %v296 = vunpack.c.l.b16 %v264
    %v297 = vunpack.c.l.b16 %v265
    %v298 = vunpack.c.l.b16 %v266
    %v299 = vunpack.c.l.b16 %v267
    %v300 = vpack.c.b16 %v285, %v284
    %v301 = vpack.c.b16 %v287, %v286
    %v302 = vpack.c.b16 %v289, %v288
    %v303 = vpack.c.b16 %v291, %v290
    %v304 = vpack.c.b16 %v293, %v292
    %v305 = vpack.c.b16 %v295, %v294
    %v306 = vpack.c.b16 %v297, %v296
    %v307 = vpack.c.b16 %v299, %v298
    %316 = vmatprep.subr.bf16.mxu0 0
    %317 = vmatpush1.bf16.xpose.msra.mxu0 %v300
    %318 = vmatprep.subr.bf16.mxu0 0
    %319 = vmatpush1.bf16.xpose.msra.mxu0 %v301
    %320 = vmatprep.subr.bf16.mxu0 0
    %321 = vmatpush1.bf16.xpose.msra.mxu0 %v302
    %322 = vmatprep.subr.bf16.mxu0 0
    %323 = vmatpush1.bf16.xpose.msra.mxu0 %v303
    %324 = vmatprep.subr.bf16.mxu0 0
    %325 = vmatpush1.bf16.xpose.msra.mxu0 %v304
    %326 = vmatprep.subr.bf16.mxu0 0
    %327 = vmatpush1.bf16.xpose.msra.mxu0 %v305
    %328 = vmatprep.subr.bf16.mxu0 0
    %329 = vmatpush1.bf16.xpose.msra.mxu0 %v306
    %330 = vmatprep.subr.bf16.mxu0 0
    %331 = vmatpush1.bf16.xpose.msra.mxu0 %v307
    %332 = vmatprep.subr.bf16.mxu0 0
    %333 = vmatpush1.bf16.xpose.msra.mxu0 0
    %334 = vmatprep.subr.bf16.mxu0 0
    %335 = vmatpush1.bf16.xpose.msra.mxu0 0
    %336 = vmatprep.subr.bf16.mxu0 0
    %337 = vmatpush1.bf16.xpose.msra.mxu0 0
    %338 = vmatprep.subr.bf16.mxu0 0
    %339 = vmatpush1.bf16.xpose.msra.mxu0 0
    %340 = vmatprep.subr.bf16.mxu0 0
    %341 = vmatpush1.bf16.xpose.msra.mxu0 0
    %342 = vmatprep.subr.bf16.mxu0 0
    %343 = vmatpush1.bf16.xpose.msra.mxu0 0
    %344 = vmatprep.subr.bf16.mxu0 0
    %345 = vmatpush1.bf16.xpose.msra.mxu0 0
    %346 = vmatprep.subr.bf16.mxu0 0
    %347 = vmatpush1.bf16.xpose.msra.mxu0 0
    %348 = vmatprep.mubr.bf16.mxu0 0
    %349 = vmatmul.mubr.bf16.gmra.mrb[0].mxu0 %v212
    %v350 = vpop.f32.mrb[0].mxu0
    %v351 = vadd.f32 0.0, %v350
    %v352 = vpop.f32.mrb[0].mxu0
    %v353 = vpop.f32.mrb[0].mxu0
    %v354 = vadd.f32 0.0, %v353
    %v355 = vpop.f32.mrb[0].mxu0
    %356 = vmatprep.mubr.bf16.mxu0 0
    %357 = vmatmul.mubr.bf16.gmra.mrb[0].mxu0 %v213
    %v358 = vpop.f32.mrb[0].mxu0
    %v359 = vadd.f32 0.0, %v358
    %v360 = vpop.f32.mrb[0].mxu0
    %v361 = vpop.f32.mrb[0].mxu0
    %v362 = vadd.f32 0.0, %v361
    %v363 = vpop.f32.mrb[0].mxu0
    %364 = vmatprep.mubr.bf16.mxu0 0
    %365 = vmatmul.mubr.bf16.gmra.mrb[0].mxu0 %v214
    %v366 = vpop.f32.mrb[0].mxu0
    %v367 = vadd.f32 0.0, %v366
    %v368 = vpop.f32.mrb[0].mxu0
    %v369 = vpop.f32.mrb[0].mxu0
    %v370 = vadd.f32 0.0, %v369
    %v371 = vpop.f32.mrb[0].mxu0
    %372 = vmatprep.mubr.bf16.mxu0 0
    %373 = vmatmul.mubr.bf16.gmra.mrb[0].mxu0 %v215
    %v374 = vpop.f32.mrb[0].mxu0
    %v375 = vadd.f32 0.0, %v374
    %v376 = vpop.f32.mrb[0].mxu0
    %v377 = vpop.f32.mrb[0].mxu0
    %v378 = vadd.f32 0.0, %v377
    %v379 = vpop.f32.mrb[0].mxu0
    %380 = vdwg.mxu0
    %v381 = vld [vmem:[%s4] sm:$0xff]
    %v382 = vld [vmem:[%s4 + $0x8] sm:$0xff]
    %v383 = vld [vmem:[%s4 + $0x10] sm:$0xff]
    %v384 = vld [vmem:[%s4 + $0x18] sm:$0xff]
    %v385 = vld [vmem:[%s4 + $0x20] sm:$0xff]
    %v386 = vld [vmem:[%s4 + $0x28] sm:$0xff]
    %v387 = vld [vmem:[%s4 + $0x30] sm:$0xff]
    %v388 = vld [vmem:[%s4 + $0x38] sm:$0xff]
    %390 = vset.pattern.permute.xlu0 0
    %391 = vperm.xlu0 %390, %v381
    %v392 = vpop.permute.xlu0 %391
    %395 = vset.pattern.permute.xlu0 0
    %396 = vperm.xlu0 %395, %v382
    %v397 = vpop.permute.xlu0 %396
    %400 = vset.pattern.permute.xlu0 0
    %401 = vperm.xlu0 %400, %v383
    %v402 = vpop.permute.xlu0 %401
    %405 = vset.pattern.permute.xlu0 0
    %406 = vperm.xlu0 %405, %v384
    %v407 = vpop.permute.xlu0 %406
    %410 = vset.pattern.permute.xlu0 0
    %411 = vperm.xlu0 %410, %v385
    %v412 = vpop.permute.xlu0 %411
    %415 = vset.pattern.permute.xlu0 0
    %416 = vperm.xlu0 %415, %v386
    %v417 = vpop.permute.xlu0 %416
    %420 = vset.pattern.permute.xlu0 0
    %421 = vperm.xlu0 %420, %v387
    %v422 = vpop.permute.xlu0 %421
    %425 = vset.pattern.permute.xlu0 0
    %426 = vperm.xlu0 %425, %v388
    %v427 = vpop.permute.xlu0 %426
    %v429 = vmul.f32 %v351, %v392
    %v430 = vmul.f32 %v354, %v397
    %v431 = vmul.f32 %v359, %v402
    %v432 = vmul.f32 %v362, %v407
    %v433 = vmul.f32 %v367, %v412
    %v434 = vmul.f32 %v370, %v417
    %v435 = vmul.f32 %v375, %v422
    %v436 = vmul.f32 %v378, %v427
    %v437 = vpack.c.bf16 %v430, %v429
    %v438 = vpack.c.bf16 %v432, %v431
    %v439 = vpack.c.bf16 %v434, %v433
    %v440 = vpack.c.bf16 %v436, %v435
    %v441 = vld [vmem:[#allocation7] sm:$0xf]
    %v442 = vld [vmem:[#allocation7 + $0x4] sm:$0xf]
    %v443 = vld [vmem:[#allocation7 + $0x8] sm:$0xf]
    %v444 = vld [vmem:[#allocation7 + $0xc] sm:$0xf]
    %v445 = vld [vmem:[#allocation7 + $0x10] sm:$0xf]
    %v446 = vld [vmem:[#allocation7 + $0x14] sm:$0xf]
    %v447 = vld [vmem:[#allocation7 + $0x18] sm:$0xf]
    %v448 = vld [vmem:[#allocation7 + $0x1c] sm:$0xf]
    %v449 = vld [vmem:[#allocation7 + $0x20] sm:$0xf]
    %v450 = vld [vmem:[#allocation7 + $0x24] sm:$0xf]
    %v451 = vld [vmem:[#allocation7 + $0x28] sm:$0xf]
    %v452 = vld [vmem:[#allocation7 + $0x2c] sm:$0xf]
    %v453 = vld [vmem:[#allocation7 + $0x30] sm:$0xf]
    %v454 = vld [vmem:[#allocation7 + $0x34] sm:$0xf]
    %v455 = vld [vmem:[#allocation7 + $0x38] sm:$0xf]
    %v456 = vld [vmem:[#allocation7 + $0x3c] sm:$0xf]
    %v473 = vunpack.c.l.b16 %v441
    %v474 = vunpack.c.l.b16 %v442
    %v475 = vunpack.c.l.b16 %v443
    %v476 = vunpack.c.l.b16 %v444
    %v477 = vunpack.c.l.b16 %v445
    %v478 = vunpack.c.l.b16 %v446
    %v479 = vunpack.c.l.b16 %v447
    %v480 = vunpack.c.l.b16 %v448
    %v481 = vunpack.c.l.b16 %v449
    %v482 = vunpack.c.l.b16 %v450
    %v483 = vunpack.c.l.b16 %v451
    %v484 = vunpack.c.l.b16 %v452
    %v485 = vunpack.c.l.b16 %v453
    %v486 = vunpack.c.l.b16 %v454
    %v487 = vunpack.c.l.b16 %v455
    %v488 = vunpack.c.l.b16 %v456
    %v489 = vpack.c.b16 %v474, %v473
    %v490 = vpack.c.b16 %v476, %v475
    %v491 = vpack.c.b16 %v478, %v477
    %v492 = vpack.c.b16 %v480, %v479
    %v493 = vpack.c.b16 %v482, %v481
    %v494 = vpack.c.b16 %v484, %v483
    %v495 = vpack.c.b16 %v486, %v485
    %v496 = vpack.c.b16 %v488, %v487
    %505 = vmatprep.subr.bf16.mxu0 0
    %506 = vmatpush1.bf16.msra.mxu0 %v489
    %507 = vmatprep.subr.bf16.mxu0 0
    %508 = vmatpush1.bf16.msra.mxu0 %v490
    %509 = vmatprep.subr.bf16.mxu0 0
    %510 = vmatpush1.bf16.msra.mxu0 %v491
    %511 = vmatprep.subr.bf16.mxu0 0
    %512 = vmatpush1.bf16.msra.mxu0 %v492
    %513 = vmatprep.subr.bf16.mxu0 0
    %514 = vmatpush1.bf16.msra.mxu0 %v493
    %515 = vmatprep.subr.bf16.mxu0 0
    %516 = vmatpush1.bf16.msra.mxu0 %v494
    %517 = vmatprep.subr.bf16.mxu0 0
    %518 = vmatpush1.bf16.msra.mxu0 %v495
    %519 = vmatprep.subr.bf16.mxu0 0
    %520 = vmatpush1.bf16.msra.mxu0 %v496
    %521 = vmatprep.subr.bf16.mxu0 0
    %522 = vmatpush1.bf16.msra.mxu0 0
    %523 = vmatprep.subr.bf16.mxu0 0
    %524 = vmatpush1.bf16.msra.mxu0 0
    %525 = vmatprep.subr.bf16.mxu0 0
    %526 = vmatpush1.bf16.msra.mxu0 0
    %527 = vmatprep.subr.bf16.mxu0 0
    %528 = vmatpush1.bf16.msra.mxu0 0
    %529 = vmatprep.subr.bf16.mxu0 0
    %530 = vmatpush1.bf16.msra.mxu0 0
    %531 = vmatprep.subr.bf16.mxu0 0
    %532 = vmatpush1.bf16.msra.mxu0 0
    %533 = vmatprep.subr.bf16.mxu0 0
    %534 = vmatpush1.bf16.msra.mxu0 0
    %535 = vmatprep.subr.bf16.mxu0 0
    %536 = vmatpush1.bf16.msra.mxu0 0
    %537 = vmatprep.mubr.bf16.mxu0 0
    %538 = vmatmul.mubr.bf16.gmra.mrb[0].mxu0 %v437
    %v539 = vpop.f32.mrb[0].mxu0
    %v540 = vadd.f32 0.0, %v539
    %v541 = vpop.f32.mrb[0].mxu0
    %v542 = vpop.f32.mrb[0].mxu0
    %v543 = vadd.f32 0.0, %v542
    %v544 = vpop.f32.mrb[0].mxu0
    %545 = vmatprep.mubr.bf16.mxu0 0
    %546 = vmatmul.mubr.bf16.gmra.mrb[0].mxu0 %v438
    %v547 = vpop.f32.mrb[0].mxu0
    %v548 = vadd.f32 0.0, %v547
    %v549 = vpop.f32.mrb[0].mxu0
    %v550 = vpop.f32.mrb[0].mxu0
    %v551 = vadd.f32 0.0, %v550
    %v552 = vpop.f32.mrb[0].mxu0
    %553 = vmatprep.mubr.bf16.mxu0 0
    %554 = vmatmul.mubr.bf16.gmra.mrb[0].mxu0 %v439
    %v555 = vpop.f32.mrb[0].mxu0
    %v556 = vadd.f32 0.0, %v555
    %v557 = vpop.f32.mrb[0].mxu0
    %v558 = vpop.f32.mrb[0].mxu0
    %v559 = vadd.f32 0.0, %v558
    %v560 = vpop.f32.mrb[0].mxu0
    %561 = vmatprep.mubr.bf16.mxu0 0
    %562 = vmatmul.mubr.bf16.gmra.mrb[0].mxu0 %v440
    %v563 = vpop.f32.mrb[0].mxu0
    %v564 = vadd.f32 0.0, %v563
    %v565 = vpop.f32.mrb[0].mxu0
    %v566 = vpop.f32.mrb[0].mxu0
    %v567 = vadd.f32 0.0, %v566
    %v568 = vpop.f32.mrb[0].mxu0
    %569 = vdwg.mxu0
    %v570 = vpack.c.bf16 %v543, %v540
    %v571 = vpack.c.bf16 %v551, %v548
    %v572 = vpack.c.bf16 %v559, %v556
    %v573 = vpack.c.bf16 %v567, %v564
    %v578 = vunpack.c.l.b16 %v570
    %v579 = vunpack.c.h.b16 %v570
    %v580 = vunpack.c.l.b16 %v571
    %v581 = vunpack.c.h.b16 %v571
    %v582 = vunpack.c.l.b16 %v572
    %v583 = vunpack.c.h.b16 %v572
    %v584 = vunpack.c.l.b16 %v573
    %v585 = vunpack.c.h.b16 %v573
    %v586 = vpack.c.b16 %v578, %v578
    %v587 = vpack.c.b16 %v579, %v579
    %v588 = vpack.c.b16 %v580, %v580
    %v589 = vpack.c.b16 %v581, %v581
    %v590 = vpack.c.b16 %v582, %v582
    %v591 = vpack.c.b16 %v583, %v583
    %v592 = vpack.c.b16 %v584, %v584
    %v593 = vpack.c.b16 %v585, %v585
    %602 = vst [vmem:[#allocation9] sm:$0xf] %v586
    %603 = vst [vmem:[#allocation9 + $0x4] sm:$0xf] %v587
    %604 = vst [vmem:[#allocation9 + $0x8] sm:$0xf] %v588
    %605 = vst [vmem:[#allocation9 + $0xc] sm:$0xf] %v589
    %606 = vst [vmem:[#allocation9 + $0x10] sm:$0xf] %v590
    %607 = vst [vmem:[#allocation9 + $0x14] sm:$0xf] %v591
    %608 = vst [vmem:[#allocation9 + $0x18] sm:$0xf] %v592
    %609 = vst [vmem:[#allocation9 + $0x1c] sm:$0xf] %v593
    // Predicated region
    $region34: #{tpu_custom_call.1} parent=1 // pred_check
      _
    $region35: #{tpu_custom_call.1} parent=1 // pred_check_branch
      %611 = sbr.rel (0) target = $region37
    $region36: #{tpu_custom_call.1} parent=1 // pred_region
      %s613 = ssub.s32 512, 512
      %614 = vsyncadd [#allocation4], %s613
      %s615 = sshll.u32 [#allocation8], 4
      %s616 = int_to_ptr.vmem [resolvable:$true] %s615
      %621 = dma.vmem_to_hbm [thread:$0]  %s616, 512, %s5, [#allocation4], 64, 64, 4
    $region37: #{tpu_custom_call.1} parent=1 // pred_fallthru
      _
    // Predicated region
    $region38: #{tpu_custom_call.1} parent=1 // pred_check
      _
    $region39: #{tpu_custom_call.1} parent=1 // pred_check_branch
      %623 = sbr.rel (0) target = $region41
    $region40: #{tpu_custom_call.1} parent=1 // pred_region
      %s625 = ssub.s32 512, 512
      %626 = vsyncadd [#allocation10], %s625
      %s627 = sshll.u32 [#allocation9], 4
      %s628 = int_to_ptr.vmem [resolvable:$true] %s627
      %633 = dma.vmem_to_hbm [thread:$0]  %s628, 512, %s6, [#allocation10], 64, 64, 4
    $region41: #{tpu_custom_call.1} parent=1 // pred_fallthru
      _
    // Predicated region
    $region42: #{tpu_custom_call.1} parent=1 // pred_check
      _
    $region43: #{tpu_custom_call.1} parent=1 // pred_check_branch
      %635 = sbr.rel (0) target = $region45
    $region44: #{tpu_custom_call.1} parent=1 // pred_region
      %636 = dma.done [#allocation4], 512
    $region45: #{tpu_custom_call.1} parent=1 // pred_fallthru
      _
    // Predicated region
    $region46: #{tpu_custom_call.1} parent=1 // pred_check
      _
    $region47: #{tpu_custom_call.1} parent=1 // pred_check_branch
      %638 = sbr.rel (0) target = $region49
    $region48: #{tpu_custom_call.1} parent=1 // pred_region
      %639 = dma.done [#allocation10], 512
    $region49: #{tpu_custom_call.1} parent=1 // pred_fallthru
      _
    %640 = vsyncpa [#allocation3], 1
    %641 = vsyncpa [#allocation6], 1
    %642 = vsyncpa [#allocation4], 1
    %643 = vsyncpa [#allocation10], 1

</llo_original>
